<compile_context>
chip_gen: v7x
topology: tpu7x:2x2x1
jax: 0.10.0
libtpu: 0.0.40
codegen_flags: <defaults>
</compile_context>

<pallas_src>
import jax
import jax.numpy as jnp
from jax.experimental import pallas as pl
from jax.experimental.pallas import tpu as pltpu

# ---- problem sizes (from the PyTorch module) --------------------------------
HIDDEN_SIZE = 2
INPUT_SIZE = 1
NUM_CLASSES = 1
NUM_LAYERS = 1
SEQ_LENGTH = 4
BATCH = 2

GP = 128  # lane width: packed gates [i0,i1,f0,f1,g0,g1,o0,o1, 0...]; fc output lanes


def lstm_fc_kernel(x_ref, wih_ref, b_ref, whh_ref, wfc_ref, bfc_ref, out_ref):
    """Full LSTM recurrence + final linear, single program (no grid).

    x_ref   : (B, T, 1)  natural batch_first input (input_size == 1)
    wih_ref : (1, GP)    packed W_ih (lane l = w_ih[l, 0]), zero-padded
    b_ref   : (1, GP)    packed b_ih + b_hh, zero-padded
    whh_ref : (8, GP)    rows 0..H-1 = W_hh^T (row j, lane l = w_hh[l, j]), rest 0
    wfc_ref : (8, GP)    rows 0..H-1 = W_fc^T (row j, lane c = w_fc[c, j]), rest 0
    bfc_ref : (1, GP)    b_fc, zero-padded
    out_ref : (B, GP)    fc(h_T); lanes >= NUM_CLASSES are exact zeros
    """
    B, T, _ = x_ref.shape
    H = HIDDEN_SIZE

    # ---- constants hoisted out of the unrolled time loop ---------------------
    lane = jax.lax.broadcasted_iota(jnp.int32, (1, GP), 1)
    g_lanes = (lane >= 2 * H) & (lane < 3 * H)                   # tanh ("g") lanes
    pre = jnp.where(g_lanes, 1.0, 0.5).astype(jnp.float32)       # pre-scale
    post_b = jnp.where(g_lanes, 0.0, 0.5).astype(jnp.float32)    # affine fixup bias
    colmask = [lane == j for j in range(H)]                      # h-column extractors

    wih = wih_ref[...]                                           # (1, GP)
    bias = b_ref[...]                                            # (1, GP)
    whh_rows = [whh_ref[j:j + 1, :] for j in range(H)]           # each (1, GP)
    wfc_rows = [wfc_ref[j:j + 1, :] for j in range(H)]           # each (1, GP)
    x_all = x_ref[...]                                           # (B, T, 1)

    # c is kept as a (B, GP) tile with lanes 0..H-1 live; h columns as (B, 1).
    c = jnp.zeros((B, GP), jnp.float32)
    hcols = [jnp.zeros((B, 1), jnp.float32) for _ in range(H)]

    # T is tiny & static -> fully unrolled; everything stays in vregs.
    for t in range(T):
        # Input projection (independent of h, so off the serial h->h chain).
        gates = x_all[:, t, :] * wih + bias                      # (B, GP) VPU FMA
        if t > 0:
            for j in range(H):                                   # h @ W_hh^T as
                gates = gates + hcols[j] * whh_rows[j]           # broadcast-FMAs
        # Single EUP transcendental for all four gates:
        #   sigmoid lanes: 0.5*tanh(x/2)+0.5 ; g lanes: tanh(x).
        act = jnp.tanh(gates * pre) * pre + post_b               # (B, GP)
        # Align f/g/o onto lanes 0..H-1 (i already there) with XLU rolls.
        f_al = pltpu.roll(act, GP - H, 1)
        g_al = pltpu.roll(act, GP - 2 * H, 1)
        o_al = pltpu.roll(act, GP - 3 * H, 1)
        c = f_al * c + act * g_al                                # lanes 0..H-1 valid
        h = o_al * jnp.tanh(c)                                   # one EUP op
        # Only the H hidden columns are extracted (needed for the next step's
        # Whh FMA and, after the last step, the final linear).
        hcols = [jnp.sum(jnp.where(colmask[j], h, 0.0), axis=1, keepdims=True)
                 for j in range(H)]

    # Final linear: out[:, k] = sum_j h_j * w_fc[k, j] + b_fc[k]; padded lanes = 0.
    out = bfc_ref[...]                                           # (1, GP)
    for j in range(H):
        out = out + hcols[j] * wfc_rows[j]                       # -> (B, GP)
    out_ref[...] = out


def prepare_params(w_ih, w_hh, b_ih, b_hh, w_fc, b_fc):
    """One-time packing of the PyTorch-layout parameters into lane-packed,
    zero-padded tiles.  Called once at parameter-load time, NOT per forward."""
    H = w_hh.shape[1]
    C = w_fc.shape[0]
    G = 4 * H
    f32 = jnp.float32
    wih_p = jnp.zeros((1, GP), f32).at[0, :G].set(w_ih[:, 0].astype(f32))
    b_p = jnp.zeros((1, GP), f32).at[0, :G].set((b_ih + b_hh).astype(f32))
    whh_p = jnp.zeros((8, GP), f32).at[:H, :G].set(w_hh.T.astype(f32))
    wfc_p = jnp.zeros((8, GP), f32).at[:H, :C].set(w_fc.T.astype(f32))
    bfc_p = jnp.zeros((1, GP), f32).at[0, :C].set(b_fc.astype(f32))
    return wih_p, b_p, whh_p, wfc_p, bfc_p


@jax.jit
def lstm_forward(x, wih_p, b_p, whh_p, wfc_p, bfc_p):
    """Per-call path: x is passed in its natural (B, T, 1) layout, no transpose
    or zero-pad HLOs; all weight packing was hoisted into prepare_params()."""
    assert x.ndim == 3 and x.shape[2] == INPUT_SIZE, x.shape
    B = x.shape[0]
    vmem = pl.BlockSpec(memory_space=pltpu.MemorySpace.VMEM)
    out_p = pl.pallas_call(
        lstm_fc_kernel,
        out_shape=jax.ShapeDtypeStruct((B, GP), jnp.float32),
        in_specs=[vmem] * 6,
        out_specs=vmem,
    )(x.astype(jnp.float32), wih_p, b_p, whh_p, wfc_p, bfc_p)
    return out_p[:, :NUM_CLASSES]


def lstm_reference(x, w_ih, w_hh, b_ih, b_hh, w_fc, b_fc):
    """Pure-JAX reference matching torch.nn.LSTM (batch_first) + Linear."""
    B, T, _ = x.shape
    H = w_hh.shape[1]
    h = jnp.zeros((B, H), jnp.float32)
    c = jnp.zeros((B, H), jnp.float32)
    for t in range(T):
        gates = x[:, t] @ w_ih.T + h @ w_hh.T + b_ih + b_hh
        i_g = jax.nn.sigmoid(gates[:, 0 * H:1 * H])
        f_g = jax.nn.sigmoid(gates[:, 1 * H:2 * H])
        g_g = jnp.tanh(gates[:, 2 * H:3 * H])
        o_g = jax.nn.sigmoid(gates[:, 3 * H:4 * H])
        c = f_g * c + i_g * g_g
        h = o_g * jnp.tanh(c)
    return h @ w_fc.T + b_fc


if __name__ == "__main__":
    key = jax.random.PRNGKey(0)
    kx, k1, k2, k3, k4, k5, k6 = jax.random.split(key, 7)

    H, I, C = HIDDEN_SIZE, INPUT_SIZE, NUM_CLASSES
    bound = 1.0 / jnp.sqrt(H)

    # deterministic synthetic parameters (PyTorch-default-like uniform init)
    w_ih = jax.random.uniform(k1, (4 * H, I), jnp.float32, -bound, bound)
    w_hh = jax.random.uniform(k2, (4 * H, H), jnp.float32, -bound, bound)
    b_ih = jax.random.uniform(k3, (4 * H,), jnp.float32, -bound, bound)
    b_hh = jax.random.uniform(k4, (4 * H,), jnp.float32, -bound, bound)
    w_fc = jax.random.uniform(k5, (C, H), jnp.float32, -bound, bound)
    b_fc = jax.random.uniform(k6, (C,), jnp.float32, -bound, bound)

    # input: batch_first (B, T, input_size)
    x = jax.random.normal(kx, (BATCH, SEQ_LENGTH, I), jnp.float32)

    # pack weights once (outside the per-call path)
    packed = prepare_params(w_ih, w_hh, b_ih, b_hh, w_fc, b_fc)
    packed = jax.tree_util.tree_map(jax.block_until_ready, packed)

    out = lstm_forward(x, *packed)
    out = jax.block_until_ready(out)

    ref = lstm_reference(x, w_ih, w_hh, b_ih, b_hh, w_fc, b_fc)
    assert out.shape == (BATCH, NUM_CLASSES), out.shape
    assert jnp.allclose(out, ref, atol=1e-5, rtol=1e-5), (out, ref)

    print("KERNEL_OK")
</pallas_src>

<mosaic_0001>
module attributes {stable_mosaic.version = 11 : i64} {
  func.func @lstm_fc_kernel(%arg0: memref<2x4x1xf32, #tpu.memory_space<vmem>>, %arg1: memref<1x128xf32, #tpu.memory_space<vmem>>, %arg2: memref<1x128xf32, #tpu.memory_space<vmem>>, %arg3: memref<8x128xf32, #tpu.memory_space<vmem>>, %arg4: memref<8x128xf32, #tpu.memory_space<vmem>>, %arg5: memref<1x128xf32, #tpu.memory_space<vmem>>, %arg6: memref<2x128xf32, #tpu.memory_space<vmem>>) attributes {dimension_semantics = [], scalar_prefetch = 0 : i64, scratch_operands = 0 : i64, tpu.core_type = #tpu.core_type<tc>} {
    %0 = tpu.iota {dimensions = array<i32: 1>} : vector<1x128xi32>
    %c4_i32 = arith.constant 4 : i32
    %1 = vector.broadcast %c4_i32 : i32 to vector<1x128xi32>
    %2 = arith.cmpi sge, %0, %1 : vector<1x128xi32>
    %c6_i32 = arith.constant 6 : i32
    %3 = vector.broadcast %c6_i32 : i32 to vector<1x128xi32>
    %4 = arith.cmpi slt, %0, %3 : vector<1x128xi32>
    %5 = arith.andi %2, %4 : vector<1x128xi1>
    %cst = arith.constant 1.000000e+00 : f32
    %cst_0 = arith.constant 5.000000e-01 : f32
    %6 = vector.broadcast %cst : f32 to vector<1x128xf32>
    %7 = vector.broadcast %cst_0 : f32 to vector<1x128xf32>
    %8 = arith.select %5, %6, %7 : vector<1x128xi1>, vector<1x128xf32>
    %cst_1 = arith.constant 0.000000e+00 : f32
    %cst_2 = arith.constant 5.000000e-01 : f32
    %9 = vector.broadcast %cst_1 : f32 to vector<1x128xf32>
    %10 = vector.broadcast %cst_2 : f32 to vector<1x128xf32>
    %11 = arith.select %5, %9, %10 : vector<1x128xi1>, vector<1x128xf32>
    %c0_i32 = arith.constant 0 : i32
    %12 = vector.broadcast %c0_i32 : i32 to vector<1x128xi32>
    %13 = arith.cmpi eq, %0, %12 : vector<1x128xi32>
    %c1_i32 = arith.constant 1 : i32
    %14 = vector.broadcast %c1_i32 : i32 to vector<1x128xi32>
    %15 = arith.cmpi eq, %0, %14 : vector<1x128xi32>
    %c0 = arith.constant 0 : index
    %c0_3 = arith.constant 0 : index
    %16 = vector.load %arg1[%c0, %c0_3] : memref<1x128xf32, #tpu.memory_space<vmem>>, vector<1x128xf32>
    %c0_4 = arith.constant 0 : index
    %c0_5 = arith.constant 0 : index
    %17 = vector.load %arg2[%c0_4, %c0_5] : memref<1x128xf32, #tpu.memory_space<vmem>>, vector<1x128xf32>
    %c0_6 = arith.constant 0 : index
    %c0_7 = arith.constant 0 : index
    %18 = vector.load %arg3[%c0_6, %c0_7] : memref<8x128xf32, #tpu.memory_space<vmem>>, vector<1x128xf32>
    %c1 = arith.constant 1 : index
    %c0_8 = arith.constant 0 : index
    %19 = vector.load %arg3[%c1, %c0_8] : memref<8x128xf32, #tpu.memory_space<vmem>>, vector<1x128xf32>
    %c0_9 = arith.constant 0 : index
    %c0_10 = arith.constant 0 : index
    %20 = vector.load %arg4[%c0_9, %c0_10] : memref<8x128xf32, #tpu.memory_space<vmem>>, vector<1x128xf32>
    %c1_11 = arith.constant 1 : index
    %c0_12 = arith.constant 0 : index
    %21 = vector.load %arg4[%c1_11, %c0_12] : memref<8x128xf32, #tpu.memory_space<vmem>>, vector<1x128xf32>
    %c0_13 = arith.constant 0 : index
    %c0_14 = arith.constant 0 : index
    %c0_15 = arith.constant 0 : index
    %22 = vector.load %arg0[%c0_13, %c0_14, %c0_15] : memref<2x4x1xf32, #tpu.memory_space<vmem>>, vector<2x4x1xf32>
    %cst_16 = arith.constant 0.000000e+00 : f32
    %23 = vector.broadcast %cst_16 : f32 to vector<2x128xf32>
    %24 = vector.extract_strided_slice %22 {offsets = [0, 0, 0], sizes = [2, 1, 1], strides = [1, 1, 1]} : vector<2x4x1xf32> to vector<2x1x1xf32>
    %25 = vector.shape_cast %24 : vector<2x1x1xf32> to vector<2x1xf32>
    %26 = vector.broadcast %25 : vector<2x1xf32> to vector<2x128xf32>
    %27 = vector.broadcast %16 : vector<1x128xf32> to vector<2x128xf32>
    %28 = arith.mulf %26, %27 : vector<2x128xf32>
    %29 = vector.broadcast %17 : vector<1x128xf32> to vector<2x128xf32>
    %30 = arith.addf %28, %29 : vector<2x128xf32>
    %31 = vector.broadcast %8 : vector<1x128xf32> to vector<2x128xf32>
    %32 = arith.mulf %30, %31 : vector<2x128xf32>
    %33 = math.tanh %32 : vector<2x128xf32>
    %34 = vector.broadcast %8 : vector<1x128xf32> to vector<2x128xf32>
    %35 = arith.mulf %33, %34 : vector<2x128xf32>
    %36 = vector.broadcast %11 : vector<1x128xf32> to vector<2x128xf32>
    %37 = arith.addf %35, %36 : vector<2x128xf32>
    %c126_i32 = arith.constant 126 : i32
    %38 = tpu.dynamic_rotate %37 by %c126_i32 dim 1 : vector<2x128xf32>, i32 -> vector<2x128xf32>
    %c124_i32 = arith.constant 124 : i32
    %39 = tpu.dynamic_rotate %37 by %c124_i32 dim 1 : vector<2x128xf32>, i32 -> vector<2x128xf32>
    %c122_i32 = arith.constant 122 : i32
    %40 = tpu.dynamic_rotate %37 by %c122_i32 dim 1 : vector<2x128xf32>, i32 -> vector<2x128xf32>
    %41 = arith.mulf %38, %23 : vector<2x128xf32>
    %42 = arith.mulf %37, %39 : vector<2x128xf32>
    %43 = arith.addf %41, %42 : vector<2x128xf32>
    %44 = math.tanh %43 : vector<2x128xf32>
    %45 = arith.mulf %40, %44 : vector<2x128xf32>
    %cst_17 = arith.constant 0.000000e+00 : f32
    %46 = vector.shape_cast %13 : vector<1x128xi1> to vector<1x128xi1>
    %47 = vector.broadcast %46 : vector<1x128xi1> to vector<2x128xi1>
    %48 = vector.broadcast %cst_17 : f32 to vector<2x128xf32>
    %49 = arith.select %47, %45, %48 : vector<2x128xi1>, vector<2x128xf32>
    %cst_18 = arith.constant dense<0.000000e+00> : vector<2xf32>
    %50 = vector.multi_reduction <add>, %49, %cst_18 [1] : vector<2x128xf32> to vector<2xf32>
    %51 = vector.shape_cast %50 : vector<2xf32> to vector<2x1xf32>
    %cst_19 = arith.constant 0.000000e+00 : f32
    %52 = vector.shape_cast %15 : vector<1x128xi1> to vector<1x128xi1>
    %53 = vector.broadcast %52 : vector<1x128xi1> to vector<2x128xi1>
    %54 = vector.broadcast %cst_19 : f32 to vector<2x128xf32>
    %55 = arith.select %53, %45, %54 : vector<2x128xi1>, vector<2x128xf32>
    %cst_20 = arith.constant dense<0.000000e+00> : vector<2xf32>
    %56 = vector.multi_reduction <add>, %55, %cst_20 [1] : vector<2x128xf32> to vector<2xf32>
    %57 = vector.shape_cast %56 : vector<2xf32> to vector<2x1xf32>
    %58 = vector.extract_strided_slice %22 {offsets = [0, 1, 0], sizes = [2, 1, 1], strides = [1, 1, 1]} : vector<2x4x1xf32> to vector<2x1x1xf32>
    %59 = vector.shape_cast %58 : vector<2x1x1xf32> to vector<2x1xf32>
    %60 = vector.broadcast %59 : vector<2x1xf32> to vector<2x128xf32>
    %61 = vector.broadcast %16 : vector<1x128xf32> to vector<2x128xf32>
    %62 = arith.mulf %60, %61 : vector<2x128xf32>
    %63 = vector.broadcast %17 : vector<1x128xf32> to vector<2x128xf32>
    %64 = arith.addf %62, %63 : vector<2x128xf32>
    %65 = vector.broadcast %51 : vector<2x1xf32> to vector<2x128xf32>
    %66 = vector.broadcast %18 : vector<1x128xf32> to vector<2x128xf32>
    %67 = arith.mulf %65, %66 : vector<2x128xf32>
    %68 = arith.addf %64, %67 : vector<2x128xf32>
    %69 = vector.broadcast %57 : vector<2x1xf32> to vector<2x128xf32>
    %70 = vector.broadcast %19 : vector<1x128xf32> to vector<2x128xf32>
    %71 = arith.mulf %69, %70 : vector<2x128xf32>
    %72 = arith.addf %68, %71 : vector<2x128xf32>
    %73 = vector.broadcast %8 : vector<1x128xf32> to vector<2x128xf32>
    %74 = arith.mulf %72, %73 : vector<2x128xf32>
    %75 = math.tanh %74 : vector<2x128xf32>
    %76 = vector.broadcast %8 : vector<1x128xf32> to vector<2x128xf32>
    %77 = arith.mulf %75, %76 : vector<2x128xf32>
    %78 = vector.broadcast %11 : vector<1x128xf32> to vector<2x128xf32>
    %79 = arith.addf %77, %78 : vector<2x128xf32>
    %c126_i32_21 = arith.constant 126 : i32
    %80 = tpu.dynamic_rotate %79 by %c126_i32_21 dim 1 : vector<2x128xf32>, i32 -> vector<2x128xf32>
    %c124_i32_22 = arith.constant 124 : i32
    %81 = tpu.dynamic_rotate %79 by %c124_i32_22 dim 1 : vector<2x128xf32>, i32 -> vector<2x128xf32>
    %c122_i32_23 = arith.constant 122 : i32
    %82 = tpu.dynamic_rotate %79 by %c122_i32_23 dim 1 : vector<2x128xf32>, i32 -> vector<2x128xf32>
    %83 = arith.mulf %80, %43 : vector<2x128xf32>
    %84 = arith.mulf %79, %81 : vector<2x128xf32>
    %85 = arith.addf %83, %84 : vector<2x128xf32>
    %86 = math.tanh %85 : vector<2x128xf32>
    %87 = arith.mulf %82, %86 : vector<2x128xf32>
    %cst_24 = arith.constant 0.000000e+00 : f32
    %88 = vector.shape_cast %13 : vector<1x128xi1> to vector<1x128xi1>
    %89 = vector.broadcast %88 : vector<1x128xi1> to vector<2x128xi1>
    %90 = vector.broadcast %cst_24 : f32 to vector<2x128xf32>
    %91 = arith.select %89, %87, %90 : vector<2x128xi1>, vector<2x128xf32>
    %cst_25 = arith.constant dense<0.000000e+00> : vector<2xf32>
    %92 = vector.multi_reduction <add>, %91, %cst_25 [1] : vector<2x128xf32> to vector<2xf32>
    %93 = vector.shape_cast %92 : vector<2xf32> to vector<2x1xf32>
    %cst_26 = arith.constant 0.000000e+00 : f32
    %94 = vector.shape_cast %15 : vector<1x128xi1> to vector<1x128xi1>
    %95 = vector.broadcast %94 : vector<1x128xi1> to vector<2x128xi1>
    %96 = vector.broadcast %cst_26 : f32 to vector<2x128xf32>
    %97 = arith.select %95, %87, %96 : vector<2x128xi1>, vector<2x128xf32>
    %cst_27 = arith.constant dense<0.000000e+00> : vector<2xf32>
    %98 = vector.multi_reduction <add>, %97, %cst_27 [1] : vector<2x128xf32> to vector<2xf32>
    %99 = vector.shape_cast %98 : vector<2xf32> to vector<2x1xf32>
    %100 = vector.extract_strided_slice %22 {offsets = [0, 2, 0], sizes = [2, 1, 1], strides = [1, 1, 1]} : vector<2x4x1xf32> to vector<2x1x1xf32>
    %101 = vector.shape_cast %100 : vector<2x1x1xf32> to vector<2x1xf32>
    %102 = vector.broadcast %101 : vector<2x1xf32> to vector<2x128xf32>
    %103 = vector.broadcast %16 : vector<1x128xf32> to vector<2x128xf32>
    %104 = arith.mulf %102, %103 : vector<2x128xf32>
    %105 = vector.broadcast %17 : vector<1x128xf32> to vector<2x128xf32>
    %106 = arith.addf %104, %105 : vector<2x128xf32>
    %107 = vector.broadcast %93 : vector<2x1xf32> to vector<2x128xf32>
    %108 = vector.broadcast %18 : vector<1x128xf32> to vector<2x128xf32>
    %109 = arith.mulf %107, %108 : vector<2x128xf32>
    %110 = arith.addf %106, %109 : vector<2x128xf32>
    %111 = vector.broadcast %99 : vector<2x1xf32> to vector<2x128xf32>
    %112 = vector.broadcast %19 : vector<1x128xf32> to vector<2x128xf32>
    %113 = arith.mulf %111, %112 : vector<2x128xf32>
    %114 = arith.addf %110, %113 : vector<2x128xf32>
    %115 = vector.broadcast %8 : vector<1x128xf32> to vector<2x128xf32>
    %116 = arith.mulf %114, %115 : vector<2x128xf32>
    %117 = math.tanh %116 : vector<2x128xf32>
    %118 = vector.broadcast %8 : vector<1x128xf32> to vector<2x128xf32>
    %119 = arith.mulf %117, %118 : vector<2x128xf32>
    %120 = vector.broadcast %11 : vector<1x128xf32> to vector<2x128xf32>
    %121 = arith.addf %119, %120 : vector<2x128xf32>
    %c126_i32_28 = arith.constant 126 : i32
    %122 = tpu.dynamic_rotate %121 by %c126_i32_28 dim 1 : vector<2x128xf32>, i32 -> vector<2x128xf32>
    %c124_i32_29 = arith.constant 124 : i32
    %123 = tpu.dynamic_rotate %121 by %c124_i32_29 dim 1 : vector<2x128xf32>, i32 -> vector<2x128xf32>
    %c122_i32_30 = arith.constant 122 : i32
    %124 = tpu.dynamic_rotate %121 by %c122_i32_30 dim 1 : vector<2x128xf32>, i32 -> vector<2x128xf32>
    %125 = arith.mulf %122, %85 : vector<2x128xf32>
    %126 = arith.mulf %121, %123 : vector<2x128xf32>
    %127 = arith.addf %125, %126 : vector<2x128xf32>
    %128 = math.tanh %127 : vector<2x128xf32>
    %129 = arith.mulf %124, %128 : vector<2x128xf32>
    %cst_31 = arith.constant 0.000000e+00 : f32
    %130 = vector.shape_cast %13 : vector<1x128xi1> to vector<1x128xi1>
    %131 = vector.broadcast %130 : vector<1x128xi1> to vector<2x128xi1>
    %132 = vector.broadcast %cst_31 : f32 to vector<2x128xf32>
    %133 = arith.select %131, %129, %132 : vector<2x128xi1>, vector<2x128xf32>
    %cst_32 = arith.constant dense<0.000000e+00> : vector<2xf32>
    %134 = vector.multi_reduction <add>, %133, %cst_32 [1] : vector<2x128xf32> to vector<2xf32>
    %135 = vector.shape_cast %134 : vector<2xf32> to vector<2x1xf32>
    %cst_33 = arith.constant 0.000000e+00 : f32
    %136 = vector.shape_cast %15 : vector<1x128xi1> to vector<1x128xi1>
    %137 = vector.broadcast %136 : vector<1x128xi1> to vector<2x128xi1>
    %138 = vector.broadcast %cst_33 : f32 to vector<2x128xf32>
    %139 = arith.select %137, %129, %138 : vector<2x128xi1>, vector<2x128xf32>
    %cst_34 = arith.constant dense<0.000000e+00> : vector<2xf32>
    %140 = vector.multi_reduction <add>, %139, %cst_34 [1] : vector<2x128xf32> to vector<2xf32>
    %141 = vector.shape_cast %140 : vector<2xf32> to vector<2x1xf32>
    %142 = vector.extract_strided_slice %22 {offsets = [0, 3, 0], sizes = [2, 1, 1], strides = [1, 1, 1]} : vector<2x4x1xf32> to vector<2x1x1xf32>
    %143 = vector.shape_cast %142 : vector<2x1x1xf32> to vector<2x1xf32>
    %144 = vector.broadcast %143 : vector<2x1xf32> to vector<2x128xf32>
    %145 = vector.broadcast %16 : vector<1x128xf32> to vector<2x128xf32>
    %146 = arith.mulf %144, %145 : vector<2x128xf32>
    %147 = vector.broadcast %17 : vector<1x128xf32> to vector<2x128xf32>
    %148 = arith.addf %146, %147 : vector<2x128xf32>
    %149 = vector.broadcast %135 : vector<2x1xf32> to vector<2x128xf32>
    %150 = vector.broadcast %18 : vector<1x128xf32> to vector<2x128xf32>
    %151 = arith.mulf %149, %150 : vector<2x128xf32>
    %152 = arith.addf %148, %151 : vector<2x128xf32>
    %153 = vector.broadcast %141 : vector<2x1xf32> to vector<2x128xf32>
    %154 = vector.broadcast %19 : vector<1x128xf32> to vector<2x128xf32>
    %155 = arith.mulf %153, %154 : vector<2x128xf32>
    %156 = arith.addf %152, %155 : vector<2x128xf32>
    %157 = vector.broadcast %8 : vector<1x128xf32> to vector<2x128xf32>
    %158 = arith.mulf %156, %157 : vector<2x128xf32>
    %159 = math.tanh %158 : vector<2x128xf32>
    %160 = vector.broadcast %8 : vector<1x128xf32> to vector<2x128xf32>
    %161 = arith.mulf %159, %160 : vector<2x128xf32>
    %162 = vector.broadcast %11 : vector<1x128xf32> to vector<2x128xf32>
    %163 = arith.addf %161, %162 : vector<2x128xf32>
    %c126_i32_35 = arith.constant 126 : i32
    %164 = tpu.dynamic_rotate %163 by %c126_i32_35 dim 1 : vector<2x128xf32>, i32 -> vector<2x128xf32>
    %c124_i32_36 = arith.constant 124 : i32
    %165 = tpu.dynamic_rotate %163 by %c124_i32_36 dim 1 : vector<2x128xf32>, i32 -> vector<2x128xf32>
    %c122_i32_37 = arith.constant 122 : i32
    %166 = tpu.dynamic_rotate %163 by %c122_i32_37 dim 1 : vector<2x128xf32>, i32 -> vector<2x128xf32>
    %167 = arith.mulf %164, %127 : vector<2x128xf32>
    %168 = arith.mulf %163, %165 : vector<2x128xf32>
    %169 = arith.addf %167, %168 : vector<2x128xf32>
    %170 = math.tanh %169 : vector<2x128xf32>
    %171 = arith.mulf %166, %170 : vector<2x128xf32>
    %cst_38 = arith.constant 0.000000e+00 : f32
    %172 = vector.shape_cast %13 : vector<1x128xi1> to vector<1x128xi1>
    %173 = vector.broadcast %172 : vector<1x128xi1> to vector<2x128xi1>
    %174 = vector.broadcast %cst_38 : f32 to vector<2x128xf32>
    %175 = arith.select %173, %171, %174 : vector<2x128xi1>, vector<2x128xf32>
    %cst_39 = arith.constant dense<0.000000e+00> : vector<2xf32>
    %176 = vector.multi_reduction <add>, %175, %cst_39 [1] : vector<2x128xf32> to vector<2xf32>
    %177 = vector.shape_cast %176 : vector<2xf32> to vector<2x1xf32>
    %cst_40 = arith.constant 0.000000e+00 : f32
    %178 = vector.shape_cast %15 : vector<1x128xi1> to vector<1x128xi1>
    %179 = vector.broadcast %178 : vector<1x128xi1> to vector<2x128xi1>
    %180 = vector.broadcast %cst_40 : f32 to vector<2x128xf32>
    %181 = arith.select %179, %171, %180 : vector<2x128xi1>, vector<2x128xf32>
    %cst_41 = arith.constant dense<0.000000e+00> : vector<2xf32>
    %182 = vector.multi_reduction <add>, %181, %cst_41 [1] : vector<2x128xf32> to vector<2xf32>
    %183 = vector.shape_cast %182 : vector<2xf32> to vector<2x1xf32>
    %c0_42 = arith.constant 0 : index
    %c0_43 = arith.constant 0 : index
    %184 = vector.load %arg5[%c0_42, %c0_43] : memref<1x128xf32, #tpu.memory_space<vmem>>, vector<1x128xf32>
    %185 = vector.broadcast %177 : vector<2x1xf32> to vector<2x128xf32>
    %186 = vector.broadcast %20 : vector<1x128xf32> to vector<2x128xf32>
    %187 = arith.mulf %185, %186 : vector<2x128xf32>
    %188 = vector.broadcast %184 : vector<1x128xf32> to vector<2x128xf32>
    %189 = arith.addf %188, %187 : vector<2x128xf32>
    %190 = vector.broadcast %183 : vector<2x1xf32> to vector<2x128xf32>
    %191 = vector.broadcast %21 : vector<1x128xf32> to vector<2x128xf32>
    %192 = arith.mulf %190, %191 : vector<2x128xf32>
    %193 = arith.addf %189, %192 : vector<2x128xf32>
    %c0_44 = arith.constant 0 : index
    %c0_45 = arith.constant 0 : index
    %194 = vector.load %arg6[%c0_44, %c0_45] : memref<2x128xf32, #tpu.memory_space<vmem>>, vector<2x128xf32>
    tpu.vector_store %arg6[%c0_44, %c0_45], %193 {strides = array<i32>} : memref<2x128xf32, #tpu.memory_space<vmem>>, vector<2x128xf32>,
    return
  }
}

</mosaic_0001>

<llo_original>
// kernel: lstm_forward.1
$region0: #{lstm_forward.1}
  #allocation0 [shape = 'u32[]', space=smem, size = 0x4, offset = 0x4, fixed_abs, tag = 'smem constant byte address 0x4 - core index']
  #allocation1 [shape = 'u32[144,128]{1,0:T(1,128)}', space=vmem, size = 0x12000, scoped, tag = 'internal scratch']
  %s0 = inlined_call_operand.vmem [shape: f32[2,4,1], index: 0, kind: input, shape index: {}]
  %s1 = inlined_call_operand.vmem [shape: f32[1,128], index: 1, kind: input, shape index: {}]
  %s2 = inlined_call_operand.hbm [shape: f32[1,128], index: 2, kind: input, shape index: {}]
  %s3 = inlined_call_operand.vmem [shape: f32[8,128], index: 3, kind: input, shape index: {}]
  %s4 = inlined_call_operand.vmem [shape: f32[8,128], index: 4, kind: input, shape index: {}]
  %s5 = inlined_call_operand.vmem [shape: f32[1,128], index: 5, kind: input, shape index: {}]
  %s6 = inlined_call_operand.vmem [shape: f32[2,128], index: 6, kind: output, shape index: {}]
  %s7 = sld [smem:[#allocation0]]
  $region38: #{lstm_forward.1} parent=0
    _
  %s9 = ssub.s32 1, %s7
  %s10 = scalar_select 0, %s9, %s7
  $region1: #{lstm_forward.1} parent=0
    #allocation2 [shape = 'u8[512]{0}', space=vmem, size = 0x400, scoped, tag = 'input window, operand 2, single buffered']
    #allocation3 [shape = 's32[1]{0}', space=sflag, size = 0x4, scoped, tag = 'scoped memory for lstm_forward.1']
    %11 = vsyncpa [#allocation3], 0
    // Predicated region
    $region2: #{lstm_forward.1} parent=1 // pred_check
      _
    $region3: #{lstm_forward.1} parent=1 // pred_check_branch
      %13 = sbr.rel (0) target = $region5
    $region4: #{lstm_forward.1} parent=1 // pred_region
      _
    $region5: #{lstm_forward.1} parent=1 // pred_fallthru
      _
    // Predicated region
    $region6: #{lstm_forward.1} parent=1 // pred_check
      _
    $region7: #{lstm_forward.1} parent=1 // pred_check_branch
      %15 = sbr.rel (0) target = $region9
    $region8: #{lstm_forward.1} parent=1 // pred_region
      _
    $region9: #{lstm_forward.1} parent=1 // pred_fallthru
      _
    // Predicated region
    $region10: #{lstm_forward.1} parent=1 // pred_check
      _
    $region11: #{lstm_forward.1} parent=1 // pred_check_branch
      %17 = sbr.rel (0) target = $region13
    $region12: #{lstm_forward.1} parent=1 // pred_region
      %s19 = ssub.s32 16, 16
      %20 = vsyncadd [#allocation3], %s19
      %s22 = sshll.u32 [#allocation2], 4
      %s23 = int_to_ptr.vmem [resolvable:$true] %s22
      %25 = dma.hbm_to_vmem [thread:$0]  %s2, 16, %s23, [#allocation3]
    $region13: #{lstm_forward.1} parent=1 // pred_fallthru
      _
    // Predicated region
    $region14: #{lstm_forward.1} parent=1 // pred_check
      _
    $region15: #{lstm_forward.1} parent=1 // pred_check_branch
      %27 = sbr.rel (0) target = $region17
    $region16: #{lstm_forward.1} parent=1 // pred_region
      _
    $region17: #{lstm_forward.1} parent=1 // pred_fallthru
      _
    // Predicated region
    $region18: #{lstm_forward.1} parent=1 // pred_check
      _
    $region19: #{lstm_forward.1} parent=1 // pred_check_branch
      %29 = sbr.rel (0) target = $region21
    $region20: #{lstm_forward.1} parent=1 // pred_region
      _
    $region21: #{lstm_forward.1} parent=1 // pred_fallthru
      _
    // Predicated region
    $region22: #{lstm_forward.1} parent=1 // pred_check
      _
    $region23: #{lstm_forward.1} parent=1 // pred_check_branch
      %31 = sbr.rel (0) target = $region25
    $region24: #{lstm_forward.1} parent=1 // pred_region
      _
    $region25: #{lstm_forward.1} parent=1 // pred_fallthru
      _
    // Predicated region
    $region26: #{lstm_forward.1} parent=1 // pred_check
      _
    $region27: #{lstm_forward.1} parent=1 // pred_check_branch
      %33 = sbr.rel (0) target = $region29
    $region28: #{lstm_forward.1} parent=1 // pred_region
      %34 = dma.done [#allocation3], 16
    $region29: #{lstm_forward.1} parent=1 // pred_fallthru
      _
    %v35 = vlaneseq
    %v36 = vand.u32 %v35, 127
    %vm37 = vcmp.ge.s32.totalorder %v36, 4
    %vm38 = vcmp.lt.s32.totalorder %v36, 6
    %vm39 = vmand %vm37, %vm38
    %v40 = vsel %vm39, 1.0, 0.5
    %v41 = vsel %vm39, 0.0, 0.5
    %vm42 = vcmp.eq.s32.totalorder %v36, 0
    %vm43 = vcmp.eq.s32.totalorder %v36, 1
    %v44 = vld [vmem:[%s1] sm:$0x1]
    %v45 = vld [vmem:[#allocation2] sm:$0x1]
    %v46 = vld [vmem:[%s3] sm:$0x1]
    %v47 = vld [vmem:[%s3 + $0x1] sm:$0x1]
    %v48 = vld [vmem:[%s4] sm:$0x1]
    %v49 = vld [vmem:[%s4 + $0x1] sm:$0x1]
    %v50 = vld [vmem:[%s0] sm:$0xf]
    %v51 = vld [vmem:[%s0 + $0x4] sm:$0xf]
    %53 = vset.pattern.permute.xlu0 0
    %54 = vperm.xlu0 %53, %v50
    %v55 = vpop.permute.xlu0 %54
    %58 = vset.pattern.permute.xlu0 0
    %59 = vperm.xlu0 %58, %v51
    %v60 = vpop.permute.xlu0 %59
    %v63 = vlaneseq
    %v64 = vshrl.u32 %v63, 7
    %v65 = vsub.s32 0, %v64
    %v66 = vrot.slane %v44, %v65
    %v68 = vmul.f32 %v55, %v66
    %v69 = vmul.f32 %v60, %v66
    %v71 = vlaneseq
    %v72 = vshrl.u32 %v71, 7
    %v73 = vsub.s32 0, %v72
    %v74 = vrot.slane %v45, %v73
    %v76 = vadd.f32 %v68, %v74
    %v77 = vadd.f32 %v69, %v74
    %v78 = vmul.f32 %v76, %v40
    %v79 = vmul.f32 %v77, %v40
    %v80 = vtanh.pop %v78
    %v81 = vtanh.pop %v79
    %v82 = vmul.f32 %v80, %v40
    %v83 = vmul.f32 %v81, %v40
    %v84 = vadd.f32 %v82, %v41
    %v85 = vadd.f32 %v83, %v41
    %v88 = vrot.slane %v85, 7
    %vm89 = vcmask 1041409
    %v90 = vsel %vm89, %v88, %v84
    %92 = vrot.lane.b32.xlu0 %v90, 126
    %v93 = vpop.permute.xlu0 %92
    %94 = vrot.lane.b32.xlu0 %v90, 124
    %v95 = vpop.permute.xlu0 %94
    %96 = vrot.lane.b32.xlu0 %v90, 122
    %v97 = vpop.permute.xlu0 %96
    %v98 = vmul.f32 %v93, 0.0
    %v100 = vrot.slane %v95, 1
    %v103 = vmul.f32 %v84, %v95
    %v104 = vmul.f32 %v85, %v100
    %v107 = vrot.slane %v104, 7
    %v108 = vsel %vm89, %v107, %v103
    %v110 = vadd.f32 %v98, %v108
    %v111 = vtanh.pop %v110
    %v112 = vmul.f32 %v97, %v111
    %v113 = vsel %vm42, 1, 0
    %vm114 = vcmp.eq.s32.totalorder %v113, 1
    %v115 = vsel %vm114, %v112, 0.0
    %vm116 = vcmask 1041408
    %v117 = vsel %vm116, %v115, 0.0
    %118 = vadd.xlane.f32.xlu0 %v117
    %v119 = vpop.xlane.xlu0 %118
    %v120 = vsel %vm43, 1, 0
    %vm121 = vcmp.eq.s32.totalorder %v120, 1
    %v122 = vsel %vm121, %v112, 0.0
    %v123 = vsel %vm116, %v122, 0.0
    %124 = vadd.xlane.f32.xlu0 %v123
    %v125 = vpop.xlane.xlu0 %124
    %v126 = vlaneseq
    %v127 = vshrl.u32 %v126, 7
    %v128 = vsub.s32 0, %v127
    %v129 = vrot.slane %v46, %v128
    %v130 = vmul.f32 %v119, %v129
    %v132 = vrot.slane %v130, 7
    %v135 = vadd.f32 %v76, %v132
    %v136 = vadd.f32 %v77, %v130
    %v137 = vlaneseq
    %v138 = vshrl.u32 %v137, 7
    %v139 = vsub.s32 0, %v138
    %v140 = vrot.slane %v47, %v139
    %v141 = vmul.f32 %v125, %v140
    %v143 = vrot.slane %v141, 7
    %v146 = vadd.f32 %v135, %v143
    %v147 = vadd.f32 %v136, %v141
    %v148 = vmul.f32 %v146, %v40
    %v149 = vmul.f32 %v147, %v40
    %v150 = vtanh.pop %v148
    %v151 = vtanh.pop %v149
    %v152 = vmul.f32 %v150, %v40
    %v153 = vmul.f32 %v151, %v40
    %v154 = vadd.f32 %v152, %v41
    %v155 = vadd.f32 %v153, %v41
    %v158 = vrot.slane %v154, 1
    %v159 = vsel %vm89, %v155, %v158
    %161 = vrot.lane.b32.xlu0 %v159, 126
    %v162 = vpop.permute.xlu0 %161
    %163 = vrot.lane.b32.xlu0 %v159, 124
    %v164 = vpop.permute.xlu0 %163
    %165 = vrot.lane.b32.xlu0 %v159, 122
    %v166 = vpop.permute.xlu0 %165
    %v167 = vmul.f32 %v162, %v110
    %v169 = vrot.slane %v164, 7
    %v172 = vmul.f32 %v154, %v169
    %v173 = vmul.f32 %v155, %v164
    %v176 = vrot.slane %v172, 1
    %v177 = vsel %vm89, %v173, %v176
    %v179 = vadd.f32 %v167, %v177
    %v180 = vtanh.pop %v179
    %v181 = vmul.f32 %v166, %v180
    %v182 = vsel %vm114, %v181, 0.0
    %v183 = vsel %vm116, %v182, 0.0
    %184 = vadd.xlane.f32.xlu0 %v183
    %v185 = vpop.xlane.xlu0 %184
    %v186 = vsel %vm121, %v181, 0.0
    %v187 = vsel %vm116, %v186, 0.0
    %188 = vadd.xlane.f32.xlu0 %v187
    %v189 = vpop.xlane.xlu0 %188
    %v190 = vmul.f32 %v185, %v129
    %v192 = vrot.slane %v190, 6
    %v193 = vrot.slane %v190, 7
    %v196 = vadd.f32 %v76, %v192
    %v197 = vadd.f32 %v77, %v193
    %v198 = vmul.f32 %v189, %v140
    %v200 = vrot.slane %v198, 6
    %v201 = vrot.slane %v198, 7
    %v204 = vadd.f32 %v196, %v200
    %v205 = vadd.f32 %v197, %v201
    %v206 = vmul.f32 %v204, %v40
    %v207 = vmul.f32 %v205, %v40
    %v208 = vtanh.pop %v206
    %v209 = vtanh.pop %v207
    %v210 = vmul.f32 %v208, %v40
    %v211 = vmul.f32 %v209, %v40
    %v212 = vadd.f32 %v210, %v41
    %v213 = vadd.f32 %v211, %v41
    %v216 = vrot.slane %v212, 2
    %v217 = vrot.slane %v213, 1
    %v218 = vsel %vm89, %v217, %v216
    %220 = vrot.lane.b32.xlu0 %v218, 126
    %v221 = vpop.permute.xlu0 %220
    %222 = vrot.lane.b32.xlu0 %v218, 124
    %v223 = vpop.permute.xlu0 %222
    %224 = vrot.lane.b32.xlu0 %v218, 122
    %v225 = vpop.permute.xlu0 %224
    %v226 = vmul.f32 %v221, %v179
    %v228 = vrot.slane %v223, 6
    %v229 = vrot.slane %v223, 7
    %v232 = vmul.f32 %v212, %v228
    %v233 = vmul.f32 %v213, %v229
    %v236 = vrot.slane %v232, 2
    %v237 = vrot.slane %v233, 1
    %v238 = vsel %vm89, %v237, %v236
    %v240 = vadd.f32 %v226, %v238
    %v241 = vtanh.pop %v240
    %v242 = vmul.f32 %v225, %v241
    %v243 = vsel %vm114, %v242, 0.0
    %v244 = vsel %vm116, %v243, 0.0
    %245 = vadd.xlane.f32.xlu0 %v244
    %v246 = vpop.xlane.xlu0 %245
    %v247 = vsel %vm121, %v242, 0.0
    %v248 = vsel %vm116, %v247, 0.0
    %249 = vadd.xlane.f32.xlu0 %v248
    %v250 = vpop.xlane.xlu0 %249
    %v251 = vmul.f32 %v246, %v129
    %v253 = vrot.slane %v251, 5
    %v254 = vrot.slane %v251, 6
    %v257 = vadd.f32 %v76, %v253
    %v258 = vadd.f32 %v77, %v254
    %v259 = vmul.f32 %v250, %v140
    %v261 = vrot.slane %v259, 5
    %v262 = vrot.slane %v259, 6
    %v265 = vadd.f32 %v257, %v261
    %v266 = vadd.f32 %v258, %v262
    %v267 = vmul.f32 %v265, %v40
    %v268 = vmul.f32 %v266, %v40
    %v269 = vtanh.pop %v267
    %v270 = vtanh.pop %v268
    %v271 = vmul.f32 %v269, %v40
    %v272 = vmul.f32 %v270, %v40
    %v273 = vadd.f32 %v271, %v41
    %v274 = vadd.f32 %v272, %v41
    %v277 = vrot.slane %v273, 3
    %v278 = vrot.slane %v274, 2
    %v279 = vsel %vm89, %v278, %v277
    %281 = vrot.lane.b32.xlu0 %v279, 126
    %v282 = vpop.permute.xlu0 %281
    %283 = vrot.lane.b32.xlu0 %v279, 124
    %v284 = vpop.permute.xlu0 %283
    %285 = vrot.lane.b32.xlu0 %v279, 122
    %v286 = vpop.permute.xlu0 %285
    %v287 = vmul.f32 %v282, %v240
    %v289 = vrot.slane %v284, 5
    %v290 = vrot.slane %v284, 6
    %v293 = vmul.f32 %v273, %v289
    %v294 = vmul.f32 %v274, %v290
    %v297 = vrot.slane %v293, 3
    %v298 = vrot.slane %v294, 2
    %v299 = vsel %vm89, %v298, %v297
    %v301 = vadd.f32 %v287, %v299
    %v302 = vtanh.pop %v301
    %v303 = vmul.f32 %v286, %v302
    %v304 = vsel %vm114, %v303, 0.0
    %v305 = vsel %vm116, %v304, 0.0
    %306 = vadd.xlane.f32.xlu0 %v305
    %v307 = vpop.xlane.xlu0 %306
    %v308 = vsel %vm121, %v303, 0.0
    %v309 = vsel %vm116, %v308, 0.0
    %310 = vadd.xlane.f32.xlu0 %v309
    %v311 = vpop.xlane.xlu0 %310
    %v312 = vld [vmem:[%s5] sm:$0x1]
    %v313 = vlaneseq
    %v314 = vshrl.u32 %v313, 7
    %v315 = vsub.s32 0, %v314
    %v316 = vrot.slane %v48, %v315
    %v317 = vmul.f32 %v307, %v316
    %v319 = vlaneseq
    %v320 = vshrl.u32 %v319, 7
    %v321 = vsub.s32 0, %v320
    %v322 = vrot.slane %v312, %v321
    %v324 = vadd.f32 %v322, %v317
    %v325 = vlaneseq
    %v326 = vshrl.u32 %v325, 7
    %v327 = vsub.s32 0, %v326
    %v328 = vrot.slane %v49, %v327
    %v329 = vmul.f32 %v311, %v328
    %v330 = vadd.f32 %v324, %v329
    %331 = vst [vmem:[%s6] sm:$0x3] %v330
    // Predicated region
    $region30: #{lstm_forward.1} parent=1 // pred_check
      _
    $region31: #{lstm_forward.1} parent=1 // pred_check_branch
      %333 = sbr.rel (0) target = $region33
    $region32: #{lstm_forward.1} parent=1 // pred_region
      _
    $region33: #{lstm_forward.1} parent=1 // pred_fallthru
      _
    // Predicated region
    $region34: #{lstm_forward.1} parent=1 // pred_check
      _
    $region35: #{lstm_forward.1} parent=1 // pred_check_branch
      %335 = sbr.rel (0) target = $region37
    $region36: #{lstm_forward.1} parent=1 // pred_region
      _
    $region37: #{lstm_forward.1} parent=1 // pred_fallthru
      _
    %336 = vsyncpa [#allocation3], 1

</llo_original>
